<compile_context>
chip_gen: v6e
topology: v6e:2x2x1
jax: 0.10.0
libtpu: 0.0.40
codegen_flags: <defaults>
</compile_context>

<pallas_src>
import functools
import math

import jax
import jax.numpy as jnp
from jax import lax
from jax.experimental import pallas as pl
from jax.experimental.pallas import tpu as pltpu


# ---------------------------------------------------------------------------
# helpers
# ---------------------------------------------------------------------------
def _round_up(x, m):
    return (x + m - 1) // m * m


def _vmem_capacity_bytes():
    try:
        info = pltpu.get_tpu_info()
        cap = int(getattr(info, "vmem_capacity_bytes", 0))
        if cap > 0:
            return cap
    except Exception:
        pass
    return 64 << 20  # conservative: v7x per-TensorCore VMEM


def _vmem_limit_bytes(block_bytes, scratch_bytes=0):
    # Blocks are (at least) double-buffered by the BlockSpec pipeline; add
    # headroom for compiler temporaries.  Cap at 3/4 of the physical VMEM of
    # whatever chip we are actually on (96 MiB on 128 MiB parts, 48 MiB on
    # v7x's 64 MiB per-core VMEM) instead of a generation-agnostic 32 MiB.
    cap = _vmem_capacity_bytes()
    ceiling = (cap * 3) // 4
    est = 2 * (2 * block_bytes + scratch_bytes) + (4 << 20)
    floor = min(16 << 20, ceiling)
    return int(min(max(est, floor), ceiling))


# ---------------------------------------------------------------------------
# Kernel 1: fused QKV projection.
# ---------------------------------------------------------------------------
def _qkv_proj_kernel(x_ref, w_ref, q_ref, k_ref, v_ref, *, scale, mm_dtype):
    x = x_ref[...].astype(mm_dtype)
    w = w_ref[...].astype(mm_dtype)
    # Single wide matmul: (Tq, d_in) @ (d_in, 3*D), f32 accumulation.
    xw = jnp.dot(x, w, preferred_element_type=jnp.float32)          # (Tq, 3*D)
    D = q_ref.shape[-1]
    # Fold 1/sqrt(d_out) into Q once (S*D mults, not per score tile).
    q_ref[...] = (xw[:, :D] * scale).astype(q_ref.dtype)
    k_ref[...] = xw[:, D:2 * D].astype(k_ref.dtype)
    v_ref[...] = xw[:, 2 * D:3 * D].astype(v_ref.dtype)


# ---------------------------------------------------------------------------
# Kernel 2: flash attention with online softmax.
# Grid = (q tiles, kv tiles); kv (reduction) axis innermost / "arbitrary".
# Output BlockSpec constant along kv -> (Tq, D) accumulator stays in VMEM.
# ---------------------------------------------------------------------------
def _flash_attn_kernel(q_ref, k_ref, v_ref, o_ref, m_sc, l_sc, acc_sc, *,
                       kv_tile, seq_len, need_mask, mm_dtype):
    kv = pl.program_id(1)

    @pl.when(kv == 0)
    def _():
        m_sc[...] = jnp.full_like(m_sc, -jnp.inf)
        l_sc[...] = jnp.zeros_like(l_sc)
        acc_sc[...] = jnp.zeros_like(acc_sc)

    def _compute():
        q = q_ref[...].astype(mm_dtype)          # (Tq, D), already scaled
        k = k_ref[...].astype(mm_dtype)          # (Tk, D)
        v = v_ref[...].astype(mm_dtype)          # (Tk, D)

        # q @ k^T via dot_general contracting last dims — no XLU transpose.
        s = lax.dot_general(q, k, dimension_numbers=(((1,), (1,)), ((), ())),
                            preferred_element_type=jnp.float32)      # (Tq, Tk)

        if need_mask:
            col = kv * kv_tile + lax.broadcasted_iota(jnp.int32, s.shape, 1)
            s = jnp.where(col < seq_len, s, -jnp.inf)

        m_prev = m_sc[...]
        m_new = jnp.maximum(m_prev, jnp.max(s, axis=-1, keepdims=True))
        alpha = jnp.exp(m_prev - m_new)
        p = jnp.exp(s - m_new)                                        # (Tq, Tk)
        l_sc[...] = alpha * l_sc[...] + jnp.sum(p, axis=-1, keepdims=True)
        acc_sc[...] = alpha * acc_sc[...] + jnp.dot(
            p.astype(mm_dtype), v, preferred_element_type=jnp.float32)
        m_sc[...] = m_new

    if need_mask:
        # Skip kv tiles that are entirely padding (possible when the lcm of
        # the tile sizes exceeds Tk); keeps the online-softmax state NaN-free.
        pl.when(kv * kv_tile < seq_len)(_compute)
    else:
        _compute()

    @pl.when(kv == pl.num_programs(1) - 1)
    def _():
        inv_l = pl.reciprocal(l_sc[...], approx=False)   # exact; (Tq,1) only
        o_ref[...] = (acc_sc[...] * inv_l).astype(o_ref.dtype)


# ---------------------------------------------------------------------------
# Wrapper
# ---------------------------------------------------------------------------
def self_attention_v2(x, w_query, w_key, w_value, *,
                      q_tile=256, kv_tile=256, mm_dtype=jnp.bfloat16,
                      kv_buffering=None):
    """x: (S, d_in); w_*: (d_in, d_out). Returns (S, d_out) in x.dtype.

    mm_dtype: dtype of the MXU matmul *inputs* and of the intermediate Q/K/V
    storage (bfloat16 by default; pass jnp.float32 / None for a full-f32
    path).  Accumulation and all softmax/elementwise math stay in f32.
    kv_buffering: optional pipeline depth for the K/V BlockSpecs
    (e.g. 3 on v5e to hide K/V DMA latency).
    """
    S, d_in = x.shape
    d_out = w_query.shape[1]
    out_dtype = x.dtype
    if mm_dtype is None:
        mm_dtype = x.dtype
    scale = 1.0 / float(d_out) ** 0.5            # true d_out, not padded D

    # Lane-dense head dim: pad d_out to a multiple of 128.  Padded Q/K columns
    # are zero -> scores unchanged; padded V columns are zero -> padded output
    # columns are zero and sliced off at the end.
    D = _round_up(max(d_out, 128), 128)
    pad_cols = D - d_out

    def _pad_w(w):
        w = w.astype(mm_dtype)
        return jnp.pad(w, ((0, 0), (0, pad_cols))) if pad_cols else w

    w_qkv = jnp.concatenate([_pad_w(w_query), _pad_w(w_key), _pad_w(w_value)],
                            axis=1)                                # (d_in, 3D)

    # Tile sizes: shrink for tiny sequences, keep sublane (8) alignment, and
    # pad S up to a common multiple so both grids are exact (ragged kv
    # positions are masked to -inf inside the kernel).
    Tq = max(8, min(q_tile, _round_up(S, 8)))
    Tk = max(8, min(kv_tile, _round_up(S, 8)))
    S_pad = _round_up(S, math.lcm(Tq, Tk))
    pad_rows = S_pad - S
    need_mask = pad_rows > 0

    x_p = x.astype(mm_dtype)
    if pad_rows:
        x_p = jnp.pad(x_p, ((0, pad_rows), (0, 0)))    # zero rows -> zero QKV

    mm_b = jnp.dtype(mm_dtype).itemsize
    out_b = jnp.dtype(out_dtype).itemsize
    f32b = 4

    # ---- pass 1: fused QKV projection -------------------------------------
    qkv_blocks = (Tq * d_in + d_in * 3 * D + 3 * Tq * D) * mm_b
    q, k, v = pl.pallas_call(
        functools.partial(_qkv_proj_kernel, scale=scale, mm_dtype=mm_dtype),
        out_shape=(
            jax.ShapeDtypeStruct((S_pad, D), mm_dtype),
            jax.ShapeDtypeStruct((S_pad, D), mm_dtype),
            jax.ShapeDtypeStruct((S_pad, D), mm_dtype),
        ),
        grid_spec=pltpu.PrefetchScalarGridSpec(
            num_scalar_prefetch=0,
            grid=(S_pad // Tq,),
            in_specs=[
                pl.BlockSpec((Tq, d_in), lambda i: (i, 0)),
                # constant index_map -> fused (bf16) weights stay VMEM-resident
                pl.BlockSpec((d_in, 3 * D), lambda i: (0, 0)),
            ],
            out_specs=[
                pl.BlockSpec((Tq, D), lambda i: (i, 0)),
                pl.BlockSpec((Tq, D), lambda i: (i, 0)),
                pl.BlockSpec((Tq, D), lambda i: (i, 0)),
            ],
        ),
        compiler_params=pltpu.CompilerParams(
            dimension_semantics=("parallel",),
            vmem_limit_bytes=_vmem_limit_bytes(qkv_blocks),
        ),
    )(x_p, w_qkv)

    # ---- pass 2: flash attention -------------------------------------------
    def _kv_spec():
        kwargs = {}
        if kv_buffering is not None:
            kwargs["pipeline_mode"] = pl.Buffered(kv_buffering)
        return pl.BlockSpec((Tk, D), lambda i, j: (j, 0), **kwargs)

    flash_blocks = (Tq * D * mm_b + Tq * D * out_b + 2 * Tk * D * mm_b)
    flash_scratch = (Tq * D + 2 * Tq) * f32b               # acc, m, l
    out_padded = pl.pallas_call(
        functools.partial(_flash_attn_kernel, kv_tile=Tk, seq_len=S,
                          need_mask=need_mask, mm_dtype=mm_dtype),
        out_shape=jax.ShapeDtypeStruct((S_pad, D), out_dtype),
        grid_spec=pltpu.PrefetchScalarGridSpec(
            num_scalar_prefetch=0,
            grid=(S_pad // Tq, S_pad // Tk),      # kv (reduction) axis innermost
            in_specs=[
                pl.BlockSpec((Tq, D), lambda i, j: (i, 0)),
                _kv_spec(),
                _kv_spec(),
            ],
            out_specs=pl.BlockSpec((Tq, D), lambda i, j: (i, 0)),
            scratch_shapes=[
                pltpu.VMEM((Tq, 1), jnp.float32),   # running max  m
                pltpu.VMEM((Tq, 1), jnp.float32),   # running sum  l
                pltpu.VMEM((Tq, D), jnp.float32),   # output accumulator
            ],
        ),
        compiler_params=pltpu.CompilerParams(
            dimension_semantics=("parallel", "arbitrary"),
            vmem_limit_bytes=_vmem_limit_bytes(flash_blocks, flash_scratch),
        ),
    )(q, k, v)

    out = out_padded
    if pad_rows:
        out = out[:S]
    if pad_cols:
        out = out[:, :d_out]
    return out


# ---------------------------------------------------------------------------
# Reference (pure JAX) and self-test
# ---------------------------------------------------------------------------
def _reference(x, wq, wk, wv):
    q = x @ wq
    k = x @ wk
    v = x @ wv
    scores = q @ k.T / jnp.sqrt(jnp.float32(k.shape[-1]))
    w = jax.nn.softmax(scores, axis=-1)
    return w @ v


if __name__ == "__main__":
    key = jax.random.PRNGKey(0)
    d_in, d_out = 64, 32

    k_x, k_q, k_k, k_v = jax.random.split(key, 4)
    # deterministic "Linear" weights, stored transposed as (d_in, d_out)
    w_query = jax.random.normal(k_q, (d_in, d_out), dtype=jnp.float32) * 0.1
    w_key = jax.random.normal(k_k, (d_in, d_out), dtype=jnp.float32) * 0.1
    w_value = jax.random.normal(k_v, (d_in, d_out), dtype=jnp.float32) * 0.1

    # 1) tile-divisible sequence, default bf16 MXU path (grid = 2 x 2).
    S = 512
    x = jax.random.normal(k_x, (S, d_in), dtype=jnp.float32)
    out = self_attention_v2(x, w_query, w_key, w_value)
    jax.block_until_ready(out)
    ref = _reference(x, w_query, w_key, w_value)
    assert out.shape == (S, d_out)
    # Tolerance sized for bf16 matmul inputs + flash-style reassociation.
    assert jnp.allclose(out, ref, atol=2e-2, rtol=2e-2), "bf16 path mismatch"

    # 2) full-f32 matmul path (tight tolerance).
    out32 = self_attention_v2(x, w_query, w_key, w_value, mm_dtype=jnp.float32)
    jax.block_until_ready(out32)
    assert jnp.allclose(out32, ref, atol=2e-3, rtol=2e-3), "f32 path mismatch"

    # 3) ragged sequence -> padded rows + masked kv columns.
    S2 = 300
    x2 = jax.random.normal(k_x, (S2, d_in), dtype=jnp.float32)
    out2 = self_attention_v2(x2, w_query, w_key, w_value)
    jax.block_until_ready(out2)
    ref2 = _reference(x2, w_query, w_key, w_value)
    assert out2.shape == (S2, d_out)
    assert jnp.allclose(out2, ref2, atol=2e-2, rtol=2e-2), "ragged path mismatch"

    print("KERNEL_OK")
</pallas_src>

<mosaic_0001>
module attributes {stable_mosaic.version = 11 : i64} {
  func.func @_qkv_proj_kernel(%arg0: i32, %arg1: memref<256x64xbf16, #tpu.memory_space<vmem>>, %arg2: memref<64x384xbf16, #tpu.memory_space<vmem>>, %arg3: memref<256x128xbf16, #tpu.memory_space<vmem>>, %arg4: memref<256x128xbf16, #tpu.memory_space<vmem>>, %arg5: memref<256x128xbf16, #tpu.memory_space<vmem>>) attributes {dimension_semantics = [#tpu.dimension_semantics<parallel>], iteration_bounds = array<i64: 2>, scalar_prefetch = 0 : i64, scratch_operands = 0 : i64, tpu.core_type = #tpu.core_type<tc>, window_params = [{transform_indices = @transform_0, window_bounds = array<i64: 256, 64>}, {pipeline_mode = #tpu.pipeline_mode<synchronous>, transform_indices = @transform_1, window_bounds = array<i64: 64, 384>}, {transform_indices = @transform_2, window_bounds = array<i64: 256, 128>}, {transform_indices = @transform_3, window_bounds = array<i64: 256, 128>}, {transform_indices = @transform_4, window_bounds = array<i64: 256, 128>}]} {
    %c0 = arith.constant 0 : index
    %c0_0 = arith.constant 0 : index
    %0 = vector.load %arg1[%c0, %c0_0] : memref<256x64xbf16, #tpu.memory_space<vmem>>, vector<256x64xbf16>
    %c0_1 = arith.constant 0 : index
    %c0_2 = arith.constant 0 : index
    %1 = vector.load %arg2[%c0_1, %c0_2] : memref<64x384xbf16, #tpu.memory_space<vmem>>, vector<64x384xbf16>
    %cst = arith.constant dense<0.000000e+00> : vector<256x384xf32>
    %2 = tpu.matmul %0, %1, %cst {dimension_numbers = #tpu.dot_dimension_numbers<[1], [0], [0], [1], [0, 0, 1, 1], [], []>} : vector<256x64xbf16>, vector<64x384xbf16>, vector<256x384xf32> -> vector<256x384xf32>
    %3 = vector.extract_strided_slice %2 {offsets = [0, 0], sizes = [256, 128], strides = [1, 1]} : vector<256x384xf32> to vector<256x128xf32>
    %cst_3 = arith.constant 0.176776692 : f32
    %4 = vector.broadcast %cst_3 : f32 to vector<256x128xf32>
    %5 = arith.mulf %3, %4 : vector<256x128xf32>
    %6 = arith.truncf %5 : vector<256x128xf32> to vector<256x128xbf16>
    %c0_4 = arith.constant 0 : index
    %c0_5 = arith.constant 0 : index
    %7 = vector.load %arg3[%c0_4, %c0_5] : memref<256x128xbf16, #tpu.memory_space<vmem>>, vector<256x128xbf16>
    tpu.vector_store %arg3[%c0_4, %c0_5], %6 {strides = array<i32>} : memref<256x128xbf16, #tpu.memory_space<vmem>>, vector<256x128xbf16>,
    %8 = vector.extract_strided_slice %2 {offsets = [0, 128], sizes = [256, 128], strides = [1, 1]} : vector<256x384xf32> to vector<256x128xf32>
    %9 = arith.truncf %8 : vector<256x128xf32> to vector<256x128xbf16>
    %c0_6 = arith.constant 0 : index
    %c0_7 = arith.constant 0 : index
    %10 = vector.load %arg4[%c0_6, %c0_7] : memref<256x128xbf16, #tpu.memory_space<vmem>>, vector<256x128xbf16>
    tpu.vector_store %arg4[%c0_6, %c0_7], %9 {strides = array<i32>} : memref<256x128xbf16, #tpu.memory_space<vmem>>, vector<256x128xbf16>,
    %11 = vector.extract_strided_slice %2 {offsets = [0, 256], sizes = [256, 128], strides = [1, 1]} : vector<256x384xf32> to vector<256x128xf32>
    %12 = arith.truncf %11 : vector<256x128xf32> to vector<256x128xbf16>
    %c0_8 = arith.constant 0 : index
    %c0_9 = arith.constant 0 : index
    %13 = vector.load %arg5[%c0_8, %c0_9] : memref<256x128xbf16, #tpu.memory_space<vmem>>, vector<256x128xbf16>
    tpu.vector_store %arg5[%c0_8, %c0_9], %12 {strides = array<i32>} : memref<256x128xbf16, #tpu.memory_space<vmem>>, vector<256x128xbf16>,
    return
  }
  func.func @transform_0(%arg0: i32) -> (i32, i32) {
    %c0_i32 = arith.constant 0 : i32
    %c0_i32_0 = arith.constant 0 : i32
    return %arg0, %c0_i32 : i32, i32
  }
  func.func @transform_1(%arg0: i32) -> (i32, i32) {
    %c0_i32 = arith.constant 0 : i32
    %c0_i32_0 = arith.constant 0 : i32
    %c0_i32_1 = arith.constant 0 : i32
    return %c0_i32, %c0_i32_0 : i32, i32
  }
  func.func @transform_2(%arg0: i32) -> (i32, i32) {
    %c0_i32 = arith.constant 0 : i32
    %c0_i32_0 = arith.constant 0 : i32
    return %arg0, %c0_i32 : i32, i32
  }
  func.func @transform_3(%arg0: i32) -> (i32, i32) {
    %c0_i32 = arith.constant 0 : i32
    %c0_i32_0 = arith.constant 0 : i32
    return %arg0, %c0_i32 : i32, i32
  }
  func.func @transform_4(%arg0: i32) -> (i32, i32) {
    %c0_i32 = arith.constant 0 : i32
    %c0_i32_0 = arith.constant 0 : i32
    return %arg0, %c0_i32 : i32, i32
  }
}

</mosaic_0001>

<llo_original>
// kernel: tpu_custom_call.1
$region0: #{tpu_custom_call.1}
  #allocation0 [shape = 'u32[]', space=smem, size = 0x4, offset = 0x4, fixed_abs, tag = 'smem constant byte address 0x4 - core index']
  #allocation1 [shape = 'u32[144,128]{1,0:T(1,128)}', space=vmem, size = 0x12000, scoped, tag = 'internal scratch']
  %s0 = inlined_call_operand.vmem [shape: bf16[512,64], index: 0, kind: input, shape index: {}]
  %s1 = inlined_call_operand.vmem [shape: bf16[64,384], index: 1, kind: input, shape index: {}]
  %s2 = inlined_call_operand.hbm [shape: bf16[512,128], index: 2, kind: output, shape index: {0}]
  %s3 = inlined_call_operand.hbm [shape: bf16[512,128], index: 3, kind: output, shape index: {1}]
  %s4 = inlined_call_operand.hbm [shape: bf16[512,128], index: 4, kind: output, shape index: {2}]
  %5 = xla_tuple %s2, %s3, %s4
  %s6 = sld [smem:[#allocation0]]
  $region57: #{tpu_custom_call.1} parent=0
    _
  %s8 = ssub.s32 1, %s6
  %s9 = scalar_select 0, %s8, %s6
  $region1: #{tpu_custom_call.1} parent=0
    #allocation2 [shape = 'u8[131072]{0}', space=vmem, size = 0x20000, scoped, tag = 'output window, operand 0']
    #allocation3 [shape = 's32[2]{0}', space=sflag, size = 0x8, scoped, tag = 'scoped memory for tpu_custom_call.1']
    #allocation4 [shape = 'u8[131072]{0}', space=vmem, size = 0x20000, scoped, tag = 'output window, operand 1']
    #allocation5 [shape = 's32[2]{0}', space=sflag, size = 0x8, scoped, tag = 'scoped memory for tpu_custom_call.1']
    #allocation6 [shape = 'u8[131072]{0}', space=vmem, size = 0x20000, scoped, tag = 'output window, operand 2']
    %10 = vsyncpa [#allocation3], 0
    %s11 = scalar_lea.sflag [#allocation3], 1
    %12 = vsyncpa %s11, 0
    %13 = vsyncpa [#allocation5], 0
    %s14 = scalar_lea.sflag [#allocation5], 1
    %15 = vsyncpa %s14, 0
    loop: start=0, step=1, limit=4
    $region2: #{tpu_custom_call.1} parent=1 // loop_pre_header
      _
    $region3: #{tpu_custom_call.1} parent=1 // loop_header
      %s17 = sphi 0, %s21
      %p18 = scmp.ge.s32.totalorder %s17, 4
      %s27 = sphi 0, %s29
      %s30 = sphi 0, %s27
      %s31 = sphi 0, %s30
      %s47 = sphi 0, %s31
      %s51 = sphi 0, %s51
      %s53 = sphi 0, %s51
      %s54 = sphi 0, %s53
      %s68 = sphi 0, %s54
      %s74 = sphi 0, %s76
      %s77 = sphi 0, %s74
      %s78 = sphi 0, %s77
      %s94 = sphi 0, %s78
      %s100 = sphi 0, %s102
      %s103 = sphi 0, %s100
      %s104 = sphi 0, %s103
      %s120 = sphi 0, %s104
      %s126 = sphi 0, %s128
      %s129 = sphi 0, %s126
      %s130 = sphi 0, %s129
      %s146 = sphi 0, %s130
    $region4: #{tpu_custom_call.1} parent=1 // loop_header_branch
      %20 = sbr.rel (%p18) target = $region8
    $region5: #{tpu_custom_call.1} parent=1 // loop_body
      %s22 = ssub.s32 %s17, 1
      %s23 = ssub.s32 %s17, 2
      %s24 = sadd.s32 %s17, 1
      %s25 = ssub.s32 %s17, %s24
      %p26 = scmp.eq.s32.totalorder %s25, 0
      %s28 = sadd.s32 %s27, 1
      %s29 = scalar_select %p26, %s27, %s28
      %p32 = pneg %p26
      %p33 = scmp.eq.s32.totalorder %s17, 1
      %p34 = por %p32, %p33
      %p35 = scmp.ne.s32.totalorder %s27, %s30
      %p36 = scmp.eq.s32.totalorder %s17, 0
      %p37 = por %p35, %p36
      %p38 = scmp.ne.s32.totalorder %s27, %s30
      %p39 = scmp.eq.s32.totalorder %s22, 1
      %p40 = por %p38, %p39
      %p41 = scmp.ne.s32.totalorder %s30, %s31
      %p42 = scmp.eq.s32.totalorder %s22, 0
      %p43 = por %p41, %p42
      %p44 = scmp.ne.s32.totalorder %s30, %s31
      %p45 = scmp.eq.s32.totalorder %s23, 1
      %p46 = por %p44, %p45
      %p48 = scmp.ne.s32.totalorder %s31, %s47
      %p49 = scmp.eq.s32.totalorder %s23, 0
      %p50 = por %p48, %p49
      %s52 = sadd.s32 %s51, 1
      %p55 = scmp.eq.s32.totalorder %s17, 1
      %p56 = scmp.ne.s32.totalorder %s51, %s53
      %p57 = scmp.eq.s32.totalorder %s17, 0
      %p58 = por %p56, %p57
      %p59 = scmp.ne.s32.totalorder %s51, %s53
      %p60 = scmp.eq.s32.totalorder %s22, 1
      %p61 = por %p59, %p60
      %p62 = scmp.ne.s32.totalorder %s53, %s54
      %p63 = scmp.eq.s32.totalorder %s22, 0
      %p64 = por %p62, %p63
      %p65 = scmp.ne.s32.totalorder %s53, %s54
      %p66 = scmp.eq.s32.totalorder %s23, 1
      %p67 = por %p65, %p66
      %p69 = scmp.ne.s32.totalorder %s54, %s68
      %p70 = scmp.eq.s32.totalorder %s23, 0
      %p71 = por %p69, %p70
      %s72 = ssub.s32 %s17, %s24
      %p73 = scmp.eq.s32.totalorder %s72, 0
      %s75 = sadd.s32 %s74, 1
      %s76 = scalar_select %p73, %s74, %s75
      %p79 = pneg %p73
      %p80 = scmp.eq.s32.totalorder %s17, 1
      %p81 = por %p79, %p80
      %p82 = scmp.ne.s32.totalorder %s74, %s77
      %p83 = scmp.eq.s32.totalorder %s17, 0
      %p84 = por %p82, %p83
      %p85 = scmp.ne.s32.totalorder %s74, %s77
      %p86 = scmp.eq.s32.totalorder %s22, 1
      %p87 = por %p85, %p86
      %p88 = scmp.ne.s32.totalorder %s77, %s78
      %p89 = scmp.eq.s32.totalorder %s22, 0
      %p90 = por %p88, %p89
      %p91 = scmp.ne.s32.totalorder %s77, %s78
      %p92 = scmp.eq.s32.totalorder %s23, 1
      %p93 = por %p91, %p92
      %p95 = scmp.ne.s32.totalorder %s78, %s94
      %p96 = scmp.eq.s32.totalorder %s23, 0
      %p97 = por %p95, %p96
      %s98 = ssub.s32 %s17, %s24
      %p99 = scmp.eq.s32.totalorder %s98, 0
      %s101 = sadd.s32 %s100, 1
      %s102 = scalar_select %p99, %s100, %s101
      %p105 = pneg %p99
      %p106 = scmp.eq.s32.totalorder %s17, 1
      %p107 = por %p105, %p106
      %p108 = scmp.ne.s32.totalorder %s100, %s103
      %p109 = scmp.eq.s32.totalorder %s17, 0
      %p110 = por %p108, %p109
      %p111 = scmp.ne.s32.totalorder %s100, %s103
      %p112 = scmp.eq.s32.totalorder %s22, 1
      %p113 = por %p111, %p112
      %p114 = scmp.ne.s32.totalorder %s103, %s104
      %p115 = scmp.eq.s32.totalorder %s22, 0
      %p116 = por %p114, %p115
      %p117 = scmp.ne.s32.totalorder %s103, %s104
      %p118 = scmp.eq.s32.totalorder %s23, 1
      %p119 = por %p117, %p118
      %p121 = scmp.ne.s32.totalorder %s104, %s120
      %p122 = scmp.eq.s32.totalorder %s23, 0
      %p123 = por %p121, %p122
      %s124 = ssub.s32 %s17, %s24
      %p125 = scmp.eq.s32.totalorder %s124, 0
      %s127 = sadd.s32 %s126, 1
      %s128 = scalar_select %p125, %s126, %s127
      %p131 = pneg %p125
      %p132 = scmp.eq.s32.totalorder %s17, 1
      %p133 = por %p131, %p132
      %p134 = scmp.ne.s32.totalorder %s126, %s129
      %p135 = scmp.eq.s32.totalorder %s17, 0
      %p136 = por %p134, %p135
      %p137 = scmp.ne.s32.totalorder %s126, %s129
      %p138 = scmp.eq.s32.totalorder %s22, 1
      %p139 = por %p137, %p138
      %p140 = scmp.ne.s32.totalorder %s129, %s130
      %p141 = scmp.eq.s32.totalorder %s22, 0
      %p142 = por %p140, %p141
      %p143 = scmp.ne.s32.totalorder %s129, %s130
      %p144 = scmp.eq.s32.totalorder %s23, 1
      %p145 = por %p143, %p144
      %p147 = scmp.ne.s32.totalorder %s130, %s146
      %p148 = scmp.eq.s32.totalorder %s23, 0
      %p149 = por %p147, %p148
      %p150 = scmp.le.s32.totalorder 1, %s17
      %p151 = scmp.lt.s32.totalorder %s17, 3
      %p152 = pnand %p150, %p151
      %p153 = pneg %p152
      // Predicated region
      $region9: #{tpu_custom_call.1} parent=5 // pred_check
        _
      $region10: #{tpu_custom_call.1} parent=5 // pred_check_branch
        %155 = sbr.rel (%p152) target = $region12
      $region11: #{tpu_custom_call.1} parent=5 // pred_region
        %s156 = ssub.s32 %s17, 1
        // Predicated region
        $region13: #{tpu_custom_call.1} parent=11 // pred_check
          %p157 = pneg %p64
        $region14: #{tpu_custom_call.1} parent=11 // pred_check_branch
          %159 = sbr.rel (%p157) target = $region16
        $region15: #{tpu_custom_call.1} parent=11 // pred_region
          _
        $region16: #{tpu_custom_call.1} parent=11 // pred_fallthru
          _
      $region12: #{tpu_custom_call.1} parent=5 // pred_fallthru
        _
      %p160 = scmp.lt.s32.totalorder %s17, 2
      // Predicated region
      $region17: #{tpu_custom_call.1} parent=5 // pred_check
        %p161 = pneg %p160
      $region18: #{tpu_custom_call.1} parent=5 // pred_check_branch
        %163 = sbr.rel (%p161) target = $region20
      $region19: #{tpu_custom_call.1} parent=5 // pred_region
        // Predicated region
        $region21: #{tpu_custom_call.1} parent=19 // pred_check
          %p164 = pneg %p37
        $region22: #{tpu_custom_call.1} parent=19 // pred_check_branch
          %166 = sbr.rel (%p164) target = $region24
        $region23: #{tpu_custom_call.1} parent=19 // pred_region
          %s167 = smul.u32 32, %s17
          %p168 = scmp.lt.s32.totalorder %s167, 63
          %s169 = scalar_select %p168, %s167, 63
          %s170 = smul.addr %s169, 4
          %s171 = scalar_lea.vmem %s0, %s170
          %s172 = smul.u32 32, %s17
        $region24: #{tpu_custom_call.1} parent=19 // pred_fallthru
          _
      $region20: #{tpu_custom_call.1} parent=5 // pred_fallthru
        _
      %p173 = scmp.le.s32.totalorder 1, %s17
      %p174 = scmp.lt.s32.totalorder %s17, 3
      %p175 = pnand %p173, %p174
      %p176 = pneg %p175
      // Predicated region
      $region25: #{tpu_custom_call.1} parent=5 // pred_check
        _
      $region26: #{tpu_custom_call.1} parent=5 // pred_check_branch
        %178 = sbr.rel (%p175) target = $region28
      $region27: #{tpu_custom_call.1} parent=5 // pred_region
        %s179 = ssub.s32 %s17, 1
        %s180 = smul.u32 32, %s22
        %p181 = scmp.lt.s32.totalorder %s180, 63
        %s182 = scalar_select %p181, %s180, 63
        %s183 = smul.addr %s182, 4
        %s184 = scalar_lea.vmem %s0, %s183
        %p185 = pneg %p43
        %p186 = pneg %p40
        %p187 = pneg %p64
        %p188 = pneg %p61
        %p189 = pneg %p90
        %p190 = pneg %p87
        %s191 = sand.u32 %s77, 1
        %s192 = scalar_lea.sflag [#allocation3], %s191
        %s193 = sand.u32 %s77, 1
        %s194 = smul.addr %s193, 128
        %s195 = scalar_lea.vmem [#allocation2], %s194
        %p196 = pneg %p116
        %p197 = pneg %p113
        %s198 = sand.u32 %s22, 1
        %s199 = scalar_lea.sflag [#allocation5], %s198
        %s200 = sand.u32 %s103, 1
        %s201 = smul.addr %s200, 128
        %s202 = scalar_lea.vmem [#allocation4], %s201
        %p203 = pneg %p142
        %p204 = pneg %p139
        %s205 = sand.u32 %s22, 1
        %s206 = scalar_lea.sflag [#allocation5], %s205
        %s207 = sand.u32 %s129, 1
        %s208 = smul.addr %s207, 128
        %s209 = scalar_lea.vmem [#allocation6], %s208
        %s210 = smul.u32 32, %s22
        %p211 = scmp.lt.s32.totalorder %s210, 63
        %s212 = scalar_select %p211, %s210, 63
        %s213 = smul.addr %s212, 4
        %s214 = scalar_lea.vmem %s0, %s213
        %s215 = smul.u32 32, %s22
        %s216 = smul.u32 32, %s22
        %s217 = smul.u32 32, %s22
        %s218 = smul.u32 32, %s22
        %v220 = vld [vmem:[%s214] sm:$0xf]
        %v221 = vld [vmem:[%s214 + $0x4] sm:$0xf]
        %v222 = vld [vmem:[%s214 + $0x8] sm:$0xf]
        %v223 = vld [vmem:[%s214 + $0xc] sm:$0xf]
        %v224 = vld [vmem:[%s214 + $0x10] sm:$0xf]
        %v225 = vld [vmem:[%s214 + $0x14] sm:$0xf]
        %v226 = vld [vmem:[%s214 + $0x18] sm:$0xf]
        %v227 = vld [vmem:[%s214 + $0x1c] sm:$0xf]
        %v228 = vld [vmem:[%s214 + $0x20] sm:$0xf]
        %v229 = vld [vmem:[%s214 + $0x24] sm:$0xf]
        %v230 = vld [vmem:[%s214 + $0x28] sm:$0xf]
        %v231 = vld [vmem:[%s214 + $0x2c] sm:$0xf]
        %v232 = vld [vmem:[%s214 + $0x30] sm:$0xf]
        %v233 = vld [vmem:[%s214 + $0x34] sm:$0xf]
        %v234 = vld [vmem:[%s214 + $0x38] sm:$0xf]
        %v235 = vld [vmem:[%s214 + $0x3c] sm:$0xf]
        %v236 = vld [vmem:[%s214 + $0x40] sm:$0xf]
        %v237 = vld [vmem:[%s214 + $0x44] sm:$0xf]
        %v238 = vld [vmem:[%s214 + $0x48] sm:$0xf]
        %v239 = vld [vmem:[%s214 + $0x4c] sm:$0xf]
        %v240 = vld [vmem:[%s214 + $0x50] sm:$0xf]
        %v241 = vld [vmem:[%s214 + $0x54] sm:$0xf]
        %v242 = vld [vmem:[%s214 + $0x58] sm:$0xf]
        %v243 = vld [vmem:[%s214 + $0x5c] sm:$0xf]
        %v244 = vld [vmem:[%s214 + $0x60] sm:$0xf]
        %v245 = vld [vmem:[%s214 + $0x64] sm:$0xf]
        %v246 = vld [vmem:[%s214 + $0x68] sm:$0xf]
        %v247 = vld [vmem:[%s214 + $0x6c] sm:$0xf]
        %v248 = vld [vmem:[%s214 + $0x70] sm:$0xf]
        %v249 = vld [vmem:[%s214 + $0x74] sm:$0xf]
        %v250 = vld [vmem:[%s214 + $0x78] sm:$0xf]
        %v251 = vld [vmem:[%s214 + $0x7c] sm:$0xf]
        %v252 = vld [vmem:[%s1] sm:$0xff]
        %v253 = vld [vmem:[%s1 + $0x8] sm:$0xf]
        %v254 = vld [vmem:[%s1 + $0xc] sm:$0xff]
        %v255 = vld [vmem:[%s1 + $0x14] sm:$0xf]
        %v256 = vld [vmem:[%s1 + $0x18] sm:$0xff]
        %v257 = vld [vmem:[%s1 + $0x20] sm:$0xf]
        %v258 = vld [vmem:[%s1 + $0x24] sm:$0xff]
        %v259 = vld [vmem:[%s1 + $0x2c] sm:$0xf]
        %v260 = vld [vmem:[%s1 + $0x30] sm:$0xff]
        %v261 = vld [vmem:[%s1 + $0x38] sm:$0xf]
        %v262 = vld [vmem:[%s1 + $0x3c] sm:$0xff]
        %v263 = vld [vmem:[%s1 + $0x44] sm:$0xf]
        %v264 = vld [vmem:[%s1 + $0x48] sm:$0xff]
        %v265 = vld [vmem:[%s1 + $0x50] sm:$0xf]
        %v266 = vld [vmem:[%s1 + $0x54] sm:$0xff]
        %v267 = vld [vmem:[%s1 + $0x5c] sm:$0xf]
        %v300 = vunpack.c.l.b16 %v220
        %v301 = vunpack.c.l.b16 %v221
        %v302 = vunpack.c.l.b16 %v222
        %v303 = vunpack.c.l.b16 %v223
        %v304 = vunpack.c.l.b16 %v224
        %v305 = vunpack.c.l.b16 %v225
        %v306 = vunpack.c.l.b16 %v226
        %v307 = vunpack.c.l.b16 %v227
        %v308 = vunpack.c.l.b16 %v228
        %v309 = vunpack.c.l.b16 %v229
        %v310 = vunpack.c.l.b16 %v230
        %v311 = vunpack.c.l.b16 %v231
        %v312 = vunpack.c.l.b16 %v232
        %v313 = vunpack.c.l.b16 %v233
        %v314 = vunpack.c.l.b16 %v234
        %v315 = vunpack.c.l.b16 %v235
        %v316 = vunpack.c.l.b16 %v236
        %v317 = vunpack.c.l.b16 %v237
        %v318 = vunpack.c.l.b16 %v238
        %v319 = vunpack.c.l.b16 %v239
        %v320 = vunpack.c.l.b16 %v240
        %v321 = vunpack.c.l.b16 %v241
        %v322 = vunpack.c.l.b16 %v242
        %v323 = vunpack.c.l.b16 %v243
        %v324 = vunpack.c.l.b16 %v244
        %v325 = vunpack.c.l.b16 %v245
        %v326 = vunpack.c.l.b16 %v246
        %v327 = vunpack.c.l.b16 %v247
        %v328 = vunpack.c.l.b16 %v248
        %v329 = vunpack.c.l.b16 %v249
        %v330 = vunpack.c.l.b16 %v250
        %v331 = vunpack.c.l.b16 %v251
        %v332 = vpack.c.b16 %v301, %v300
        %v333 = vpack.c.b16 %v303, %v302
        %v334 = vpack.c.b16 %v305, %v304
        %v335 = vpack.c.b16 %v307, %v306
        %v336 = vpack.c.b16 %v309, %v308
        %v337 = vpack.c.b16 %v311, %v310
        %v338 = vpack.c.b16 %v313, %v312
        %v339 = vpack.c.b16 %v315, %v314
        %v340 = vpack.c.b16 %v317, %v316
        %v341 = vpack.c.b16 %v319, %v318
        %v342 = vpack.c.b16 %v321, %v320
        %v343 = vpack.c.b16 %v323, %v322
        %v344 = vpack.c.b16 %v325, %v324
        %v345 = vpack.c.b16 %v327, %v326
        %v346 = vpack.c.b16 %v329, %v328
        %v347 = vpack.c.b16 %v331, %v330
        %v364 = vunpack.c.l.b16 %v252
        %v365 = vunpack.c.h.b16 %v252
        %v366 = vunpack.c.l.b16 %v253
        %v367 = vunpack.c.l.b16 %v254
        %v368 = vunpack.c.h.b16 %v254
        %v369 = vunpack.c.l.b16 %v255
        %v370 = vunpack.c.l.b16 %v256
        %v371 = vunpack.c.h.b16 %v256
        %v372 = vunpack.c.l.b16 %v257
        %v373 = vunpack.c.l.b16 %v258
        %v374 = vunpack.c.h.b16 %v258
        %v375 = vunpack.c.l.b16 %v259
        %v376 = vunpack.c.l.b16 %v260
        %v377 = vunpack.c.h.b16 %v260
        %v378 = vunpack.c.l.b16 %v261
        %v379 = vunpack.c.l.b16 %v262
        %v380 = vunpack.c.h.b16 %v262
        %v381 = vunpack.c.l.b16 %v263
        %v382 = vunpack.c.l.b16 %v264
        %v383 = vunpack.c.h.b16 %v264
        %v384 = vunpack.c.l.b16 %v265
        %v385 = vunpack.c.l.b16 %v266
        %v386 = vunpack.c.h.b16 %v266
        %v387 = vunpack.c.l.b16 %v267
        %v388 = vpack.c.b16 %v367, %v364
        %v389 = vpack.c.b16 %v368, %v365
        %v390 = vpack.c.b16 %v369, %v366
        %v391 = vpack.c.b16 %v373, %v370
        %v392 = vpack.c.b16 %v374, %v371
        %v393 = vpack.c.b16 %v375, %v372
        %v394 = vpack.c.b16 %v379, %v376
        %v395 = vpack.c.b16 %v380, %v377
        %v396 = vpack.c.b16 %v381, %v378
        %v397 = vpack.c.b16 %v385, %v382
        %v398 = vpack.c.b16 %v386, %v383
        %v399 = vpack.c.b16 %v387, %v384
        %vm412 = vcmask 523264
        %v414 = vsel %vm412, %v332, 0
        %v417 = vsel %vm412, %v333, 0
        %v420 = vsel %vm412, %v334, 0
        %v423 = vsel %vm412, %v335, 0
        %v426 = vsel %vm412, %v336, 0
        %v429 = vsel %vm412, %v337, 0
        %v432 = vsel %vm412, %v338, 0
        %v435 = vsel %vm412, %v339, 0
        %v438 = vsel %vm412, %v340, 0
        %v441 = vsel %vm412, %v341, 0
        %v444 = vsel %vm412, %v342, 0
        %v447 = vsel %vm412, %v343, 0
        %v450 = vsel %vm412, %v344, 0
        %v453 = vsel %vm412, %v345, 0
        %v456 = vsel %vm412, %v346, 0
        %v459 = vsel %vm412, %v347, 0
        %461 = vmatprep.subr.bf16.mxu0 0
        %462 = vmatpush1.bf16.msra.mxu0 0
        %463 = vmatprep.subr.bf16.mxu0 0
        %464 = vmatpush1.bf16.msra.mxu0 0
        %465 = vmatprep.subr.bf16.mxu0 0
        %466 = vmatpush1.bf16.msra.mxu0 0
        %467 = vmatprep.subr.bf16.mxu0 0
        %468 = vmatpush1.bf16.msra.mxu0 0
        %469 = vmatprep.subr.bf16.mxu0 %v398
        %470 = vmatpush1.bf16.msra.mxu0 %v397
        %471 = vmatprep.subr.bf16.mxu0 %v395
        %472 = vmatpush1.bf16.msra.mxu0 %v394
        %473 = vmatprep.subr.bf16.mxu0 %v392
        %474 = vmatpush1.bf16.msra.mxu0 %v391
        %475 = vmatprep.subr.bf16.mxu0 %v389
        %476 = vmatpush1.bf16.msra.mxu0 %v388
        %477 = vmatprep.subr.bf16.mxu0 0
        %478 = vmatpush2.bf16.msra.mxu0 0
        %479 = vmatprep.subr.bf16.mxu0 0
        %480 = vmatpush2.bf16.msra.mxu0 0
        %481 = vmatprep.subr.bf16.mxu0 0
        %482 = vmatpush2.bf16.msra.mxu0 0
        %483 = vmatprep.subr.bf16.mxu0 0
        %484 = vmatpush2.bf16.msra.mxu0 0
        %485 = vmatprep.subr.bf16.mxu0 0
        %486 = vmatpush2.bf16.msra.mxu0 0
        %487 = vmatprep.subr.bf16.mxu0 0
        %488 = vmatpush2.bf16.msra.mxu0 0
        %489 = vmatprep.subr.bf16.mxu0 0
        %490 = vmatpush2.bf16.msra.mxu0 0
        %491 = vmatprep.subr.bf16.mxu0 0
        %492 = vmatpush2.bf16.msra.mxu0 0
        %493 = vmatprep.mubr.bf16.mxu0 0
        %494 = vmatmul.mubr.bf16.gmra.mxu0 %v414
        %v495 = vpop.f32.mrf.mxu0
        %v496 = vadd.f32 0.0, %v495
        %v497 = vpop.f32.mrf.mxu0
        %v498 = vadd.f32 0.0, %v497
        %v499 = vpop.f32.mrf.mxu0
        %v500 = vadd.f32 0.0, %v499
        %v501 = vpop.f32.mrf.mxu0
        %v502 = vadd.f32 0.0, %v501
        %503 = vmatprep.mubr.bf16.mxu0 0
        %504 = vmatmul.mubr.bf16.gmra.mxu0 %v417
        %v505 = vpop.f32.mrf.mxu0
        %v506 = vadd.f32 0.0, %v505
        %v507 = vpop.f32.mrf.mxu0
        %v508 = vadd.f32 0.0, %v507
        %v509 = vpop.f32.mrf.mxu0
        %v510 = vadd.f32 0.0, %v509
        %v511 = vpop.f32.mrf.mxu0
        %v512 = vadd.f32 0.0, %v511
        %513 = vmatprep.mubr.bf16.mxu0 0
        %514 = vmatmul.mubr.bf16.gmra.mxu0 %v420
        %v515 = vpop.f32.mrf.mxu0
        %v516 = vadd.f32 0.0, %v515
        %v517 = vpop.f32.mrf.mxu0
        %v518 = vadd.f32 0.0, %v517
        %v519 = vpop.f32.mrf.mxu0
        %v520 = vadd.f32 0.0, %v519
        %v521 = vpop.f32.mrf.mxu0
        %v522 = vadd.f32 0.0, %v521
        %523 = vmatprep.mubr.bf16.mxu0 0
        %524 = vmatmul.mubr.bf16.gmra.mxu0 %v423
        %v525 = vpop.f32.mrf.mxu0
        %v526 = vadd.f32 0.0, %v525
        %v527 = vpop.f32.mrf.mxu0
        %v528 = vadd.f32 0.0, %v527
        %v529 = vpop.f32.mrf.mxu0
        %v530 = vadd.f32 0.0, %v529
        %v531 = vpop.f32.mrf.mxu0
        %v532 = vadd.f32 0.0, %v531
        %533 = vmatprep.mubr.bf16.mxu0 0
        %534 = vmatmul.mubr.bf16.gmra.mxu0 %v426
        %v535 = vpop.f32.mrf.mxu0
        %v536 = vadd.f32 0.0, %v535
        %v537 = vpop.f32.mrf.mxu0
        %v538 = vadd.f32 0.0, %v537
        %v539 = vpop.f32.mrf.mxu0
        %v540 = vadd.f32 0.0, %v539
        %v541 = vpop.f32.mrf.mxu0
        %v542 = vadd.f32 0.0, %v541
        %543 = vmatprep.mubr.bf16.mxu0 0
        %544 = vmatmul.mubr.bf16.gmra.mxu0 %v429
        %v545 = vpop.f32.mrf.mxu0
        %v546 = vadd.f32 0.0, %v545
        %v547 = vpop.f32.mrf.mxu0
        %v548 = vadd.f32 0.0, %v547
        %v549 = vpop.f32.mrf.mxu0
        %v550 = vadd.f32 0.0, %v549
        %v551 = vpop.f32.mrf.mxu0
        %v552 = vadd.f32 0.0, %v551
        %553 = vmatprep.mubr.bf16.mxu0 0
        %554 = vmatmul.mubr.bf16.gmra.mxu0 %v432
        %v555 = vpop.f32.mrf.mxu0
        %v556 = vadd.f32 0.0, %v555
        %v557 = vpop.f32.mrf.mxu0
        %v558 = vadd.f32 0.0, %v557
        %v559 = vpop.f32.mrf.mxu0
        %v560 = vadd.f32 0.0, %v559
        %v561 = vpop.f32.mrf.mxu0
        %v562 = vadd.f32 0.0, %v561
        %563 = vmatprep.mubr.bf16.mxu0 0
        %564 = vmatmul.mubr.bf16.gmra.mxu0 %v435
        %v565 = vpop.f32.mrf.mxu0
        %v566 = vadd.f32 0.0, %v565
        %v567 = vpop.f32.mrf.mxu0
        %v568 = vadd.f32 0.0, %v567
        %v569 = vpop.f32.mrf.mxu0
        %v570 = vadd.f32 0.0, %v569
        %v571 = vpop.f32.mrf.mxu0
        %v572 = vadd.f32 0.0, %v571
        %573 = vmatprep.mubr.bf16.mxu0 0
        %574 = vmatmul.mubr.bf16.gmra.mxu0 %v438
        %v575 = vpop.f32.mrf.mxu0
        %v576 = vadd.f32 0.0, %v575
        %v577 = vpop.f32.mrf.mxu0
        %v578 = vadd.f32 0.0, %v577
        %v579 = vpop.f32.mrf.mxu0
        %v580 = vadd.f32 0.0, %v579
        %v581 = vpop.f32.mrf.mxu0
        %v582 = vadd.f32 0.0, %v581
        %583 = vmatprep.mubr.bf16.mxu0 0
        %584 = vmatmul.mubr.bf16.gmra.mxu0 %v441
        %v585 = vpop.f32.mrf.mxu0
        %v586 = vadd.f32 0.0, %v585
        %v587 = vpop.f32.mrf.mxu0
        %v588 = vadd.f32 0.0, %v587
        %v589 = vpop.f32.mrf.mxu0
        %v590 = vadd.f32 0.0, %v589
        %v591 = vpop.f32.mrf.mxu0
        %v592 = vadd.f32 0.0, %v591
        %593 = vmatprep.mubr.bf16.mxu0 0
        %594 = vmatmul.mubr.bf16.gmra.mxu0 %v444
        %v595 = vpop.f32.mrf.mxu0
        %v596 = vadd.f32 0.0, %v595
        %v597 = vpop.f32.mrf.mxu0
        %v598 = vadd.f32 0.0, %v597
        %v599 = vpop.f32.mrf.mxu0
        %v600 = vadd.f32 0.0, %v599
        %v601 = vpop.f32.mrf.mxu0
        %v602 = vadd.f32 0.0, %v601
        %603 = vmatprep.mubr.bf16.mxu0 0
        %604 = vmatmul.mubr.bf16.gmra.mxu0 %v447
        %v605 = vpop.f32.mrf.mxu0
        %v606 = vadd.f32 0.0, %v605
        %v607 = vpop.f32.mrf.mxu0
        %v608 = vadd.f32 0.0, %v607
        %v609 = vpop.f32.mrf.mxu0
        %v610 = vadd.f32 0.0, %v609
        %v611 = vpop.f32.mrf.mxu0
        %v612 = vadd.f32 0.0, %v611
        %613 = vmatprep.mubr.bf16.mxu0 0
        %614 = vmatmul.mubr.bf16.gmra.mxu0 %v450
        %v615 = vpop.f32.mrf.mxu0
        %v616 = vadd.f32 0.0, %v615
        %v617 = vpop.f32.mrf.mxu0
        %v618 = vadd.f32 0.0, %v617
        %v619 = vpop.f32.mrf.mxu0
        %v620 = vadd.f32 0.0, %v619
        %v621 = vpop.f32.mrf.mxu0
        %v622 = vadd.f32 0.0, %v621
        %623 = vmatprep.mubr.bf16.mxu0 0
        %624 = vmatmul.mubr.bf16.gmra.mxu0 %v453
        %v625 = vpop.f32.mrf.mxu0
        %v626 = vadd.f32 0.0, %v625
        %v627 = vpop.f32.mrf.mxu0
        %v628 = vadd.f32 0.0, %v627
        %v629 = vpop.f32.mrf.mxu0
        %v630 = vadd.f32 0.0, %v629
        %v631 = vpop.f32.mrf.mxu0
        %v632 = vadd.f32 0.0, %v631
        %633 = vmatprep.mubr.bf16.mxu0 0
        %634 = vmatmul.mubr.bf16.gmra.mxu0 %v456
        %v635 = vpop.f32.mrf.mxu0
        %v636 = vadd.f32 0.0, %v635
        %v637 = vpop.f32.mrf.mxu0
        %v638 = vadd.f32 0.0, %v637
        %v639 = vpop.f32.mrf.mxu0
        %v640 = vadd.f32 0.0, %v639
        %v641 = vpop.f32.mrf.mxu0
        %v642 = vadd.f32 0.0, %v641
        %643 = vmatprep.mubr.bf16.mxu0 0
        %644 = vmatmul.mubr.bf16.gmra.mxu0 %v459
        %v645 = vpop.f32.mrf.mxu0
        %v646 = vadd.f32 0.0, %v645
        %v647 = vpop.f32.mrf.mxu0
        %v648 = vadd.f32 0.0, %v647
        %v649 = vpop.f32.mrf.mxu0
        %v650 = vadd.f32 0.0, %v649
        %v651 = vpop.f32.mrf.mxu0
        %v652 = vadd.f32 0.0, %v651
        %653 = vdwg.mxu0
        %654 = vmatprep.subr.bf16.mxu0 0
        %655 = vmatpush1.bf16.msra.mxu0 0
        %656 = vmatprep.subr.bf16.mxu0 0
        %657 = vmatpush1.bf16.msra.mxu0 0
        %658 = vmatprep.subr.bf16.mxu0 0
        %659 = vmatpush1.bf16.msra.mxu0 0
        %660 = vmatprep.subr.bf16.mxu0 0
        %661 = vmatpush1.bf16.msra.mxu0 0
        %662 = vmatprep.subr.bf16.mxu0 0
        %663 = vmatpush1.bf16.msra.mxu0 %v399
        %664 = vmatprep.subr.bf16.mxu0 0
        %665 = vmatpush1.bf16.msra.mxu0 %v396
        %666 = vmatprep.subr.bf16.mxu0 0
        %667 = vmatpush1.bf16.msra.mxu0 %v393
        %668 = vmatprep.subr.bf16.mxu0 0
        %669 = vmatpush1.bf16.msra.mxu0 %v390
        %670 = vmatprep.subr.bf16.mxu0 0
        %671 = vmatpush2.bf16.msra.mxu0 0
        %672 = vmatprep.subr.bf16.mxu0 0
        %673 = vmatpush2.bf16.msra.mxu0 0
        %674 = vmatprep.subr.bf16.mxu0 0
        %675 = vmatpush2.bf16.msra.mxu0 0
        %676 = vmatprep.subr.bf16.mxu0 0
        %677 = vmatpush2.bf16.msra.mxu0 0
        %678 = vmatprep.subr.bf16.mxu0 0
        %679 = vmatpush2.bf16.msra.mxu0 0
        %680 = vmatprep.subr.bf16.mxu0 0
        %681 = vmatpush2.bf16.msra.mxu0 0
        %682 = vmatprep.subr.bf16.mxu0 0
        %683 = vmatpush2.bf16.msra.mxu0 0
        %684 = vmatprep.subr.bf16.mxu0 0
        %685 = vmatpush2.bf16.msra.mxu0 0
        %686 = vmatprep.mubr.bf16.mxu0 0
        %687 = vmatmul.mubr.bf16.gmra.mxu0 %v414
        %v688 = vpop.f32.mrf.mxu0
        %v689 = vadd.f32 0.0, %v688
        %v690 = vpop.f32.mrf.mxu0
        %v691 = vpop.f32.mrf.mxu0
        %v692 = vadd.f32 0.0, %v691
        %v693 = vpop.f32.mrf.mxu0
        %694 = vmatprep.mubr.bf16.mxu0 0
        %695 = vmatmul.mubr.bf16.gmra.mxu0 %v417
        %v696 = vpop.f32.mrf.mxu0
        %v697 = vadd.f32 0.0, %v696
        %v698 = vpop.f32.mrf.mxu0
        %v699 = vpop.f32.mrf.mxu0
        %v700 = vadd.f32 0.0, %v699
        %v701 = vpop.f32.mrf.mxu0
        %702 = vmatprep.mubr.bf16.mxu0 0
        %703 = vmatmul.mubr.bf16.gmra.mxu0 %v420
        %v704 = vpop.f32.mrf.mxu0
        %v705 = vadd.f32 0.0, %v704
        %v706 = vpop.f32.mrf.mxu0
        %v707 = vpop.f32.mrf.mxu0
        %v708 = vadd.f32 0.0, %v707
        %v709 = vpop.f32.mrf.mxu0
        %710 = vmatprep.mubr.bf16.mxu0 0
        %711 = vmatmul.mubr.bf16.gmra.mxu0 %v423
        %v712 = vpop.f32.mrf.mxu0
        %v713 = vadd.f32 0.0, %v712
        %v714 = vpop.f32.mrf.mxu0
        %v715 = vpop.f32.mrf.mxu0
        %v716 = vadd.f32 0.0, %v715
        %v717 = vpop.f32.mrf.mxu0
        %718 = vmatprep.mubr.bf16.mxu0 0
        %719 = vmatmul.mubr.bf16.gmra.mxu0 %v426
        %v720 = vpop.f32.mrf.mxu0
        %v721 = vadd.f32 0.0, %v720
        %v722 = vpop.f32.mrf.mxu0
        %v723 = vpop.f32.mrf.mxu0
        %v724 = vadd.f32 0.0, %v723
        %v725 = vpop.f32.mrf.mxu0
        %726 = vmatprep.mubr.bf16.mxu0 0
        %727 = vmatmul.mubr.bf16.gmra.mxu0 %v429
        %v728 = vpop.f32.mrf.mxu0
        %v729 = vadd.f32 0.0, %v728
        %v730 = vpop.f32.mrf.mxu0
        %v731 = vpop.f32.mrf.mxu0
        %v732 = vadd.f32 0.0, %v731
        %v733 = vpop.f32.mrf.mxu0
        %734 = vmatprep.mubr.bf16.mxu0 0
        %735 = vmatmul.mubr.bf16.gmra.mxu0 %v432
        %v736 = vpop.f32.mrf.mxu0
        %v737 = vadd.f32 0.0, %v736
        %v738 = vpop.f32.mrf.mxu0
        %v739 = vpop.f32.mrf.mxu0
        %v740 = vadd.f32 0.0, %v739
        %v741 = vpop.f32.mrf.mxu0
        %742 = vmatprep.mubr.bf16.mxu0 0
        %743 = vmatmul.mubr.bf16.gmra.mxu0 %v435
        %v744 = vpop.f32.mrf.mxu0
        %v745 = vadd.f32 0.0, %v744
        %v746 = vpop.f32.mrf.mxu0
        %v747 = vpop.f32.mrf.mxu0
        %v748 = vadd.f32 0.0, %v747
        %v749 = vpop.f32.mrf.mxu0
        %750 = vmatprep.mubr.bf16.mxu0 0
        %751 = vmatmul.mubr.bf16.gmra.mxu0 %v438
        %v752 = vpop.f32.mrf.mxu0
        %v753 = vadd.f32 0.0, %v752
        %v754 = vpop.f32.mrf.mxu0
        %v755 = vpop.f32.mrf.mxu0
        %v756 = vadd.f32 0.0, %v755
        %v757 = vpop.f32.mrf.mxu0
        %758 = vmatprep.mubr.bf16.mxu0 0
        %759 = vmatmul.mubr.bf16.gmra.mxu0 %v441
        %v760 = vpop.f32.mrf.mxu0
        %v761 = vadd.f32 0.0, %v760
        %v762 = vpop.f32.mrf.mxu0
        %v763 = vpop.f32.mrf.mxu0
        %v764 = vadd.f32 0.0, %v763
        %v765 = vpop.f32.mrf.mxu0
        %766 = vmatprep.mubr.bf16.mxu0 0
        %767 = vmatmul.mubr.bf16.gmra.mxu0 %v444
        %v768 = vpop.f32.mrf.mxu0
        %v769 = vadd.f32 0.0, %v768
        %v770 = vpop.f32.mrf.mxu0
        %v771 = vpop.f32.mrf.mxu0
        %v772 = vadd.f32 0.0, %v771
        %v773 = vpop.f32.mrf.mxu0
        %774 = vmatprep.mubr.bf16.mxu0 0
        %775 = vmatmul.mubr.bf16.gmra.mxu0 %v447
        %v776 = vpop.f32.mrf.mxu0
        %v777 = vadd.f32 0.0, %v776
        %v778 = vpop.f32.mrf.mxu0
        %v779 = vpop.f32.mrf.mxu0
        %v780 = vadd.f32 0.0, %v779
        %v781 = vpop.f32.mrf.mxu0
        %782 = vmatprep.mubr.bf16.mxu0 0
        %783 = vmatmul.mubr.bf16.gmra.mxu0 %v450
        %v784 = vpop.f32.mrf.mxu0
        %v785 = vadd.f32 0.0, %v784
        %v786 = vpop.f32.mrf.mxu0
        %v787 = vpop.f32.mrf.mxu0
        %v788 = vadd.f32 0.0, %v787
        %v789 = vpop.f32.mrf.mxu0
        %790 = vmatprep.mubr.bf16.mxu0 0
        %791 = vmatmul.mubr.bf16.gmra.mxu0 %v453
        %v792 = vpop.f32.mrf.mxu0
        %v793 = vadd.f32 0.0, %v792
        %v794 = vpop.f32.mrf.mxu0
        %v795 = vpop.f32.mrf.mxu0
        %v796 = vadd.f32 0.0, %v795
        %v797 = vpop.f32.mrf.mxu0
        %798 = vmatprep.mubr.bf16.mxu0 0
        %799 = vmatmul.mubr.bf16.gmra.mxu0 %v456
        %v800 = vpop.f32.mrf.mxu0
        %v801 = vadd.f32 0.0, %v800
        %v802 = vpop.f32.mrf.mxu0
        %v803 = vpop.f32.mrf.mxu0
        %v804 = vadd.f32 0.0, %v803
        %v805 = vpop.f32.mrf.mxu0
        %806 = vmatprep.mubr.bf16.mxu0 0
        %807 = vmatmul.mubr.bf16.gmra.mxu0 %v459
        %v808 = vpop.f32.mrf.mxu0
        %v809 = vadd.f32 0.0, %v808
        %v810 = vpop.f32.mrf.mxu0
        %v811 = vpop.f32.mrf.mxu0
        %v812 = vadd.f32 0.0, %v811
        %v813 = vpop.f32.mrf.mxu0
        %814 = vdwg.mxu0
        %v815 = vmul.f32 %v496, 0.17677669
        %v816 = vmul.f32 %v500, 0.17677669
        %v817 = vmul.f32 %v506, 0.17677669
        %v818 = vmul.f32 %v510, 0.17677669
        %v819 = vmul.f32 %v516, 0.17677669
        %v820 = vmul.f32 %v520, 0.17677669
        %v821 = vmul.f32 %v526, 0.17677669
        %v822 = vmul.f32 %v530, 0.17677669
        %v823 = vmul.f32 %v536, 0.17677669
        %v824 = vmul.f32 %v540, 0.17677669
        %v825 = vmul.f32 %v546, 0.17677669
        %v826 = vmul.f32 %v550, 0.17677669
        %v827 = vmul.f32 %v556, 0.17677669
        %v828 = vmul.f32 %v560, 0.17677669
        %v829 = vmul.f32 %v566, 0.17677669
        %v830 = vmul.f32 %v570, 0.17677669
        %v831 = vmul.f32 %v576, 0.17677669
        %v832 = vmul.f32 %v580, 0.17677669
        %v833 = vmul.f32 %v586, 0.17677669
        %v834 = vmul.f32 %v590, 0.17677669
        %v835 = vmul.f32 %v596, 0.17677669
        %v836 = vmul.f32 %v600, 0.17677669
        %v837 = vmul.f32 %v606, 0.17677669
        %v838 = vmul.f32 %v610, 0.17677669
        %v839 = vmul.f32 %v616, 0.17677669
        %v840 = vmul.f32 %v620, 0.17677669
        %v841 = vmul.f32 %v626, 0.17677669
        %v842 = vmul.f32 %v630, 0.17677669
        %v843 = vmul.f32 %v636, 0.17677669
        %v844 = vmul.f32 %v640, 0.17677669
        %v845 = vmul.f32 %v646, 0.17677669
        %v846 = vmul.f32 %v650, 0.17677669
        %v847 = vpack.c.bf16 %v816, %v815
        %v848 = vpack.c.bf16 %v818, %v817
        %v849 = vpack.c.bf16 %v820, %v819
        %v850 = vpack.c.bf16 %v822, %v821
        %v851 = vpack.c.bf16 %v824, %v823
        %v852 = vpack.c.bf16 %v826, %v825
        %v853 = vpack.c.bf16 %v828, %v827
        %v854 = vpack.c.bf16 %v830, %v829
        %v855 = vpack.c.bf16 %v832, %v831
        %v856 = vpack.c.bf16 %v834, %v833
        %v857 = vpack.c.bf16 %v836, %v835
        %v858 = vpack.c.bf16 %v838, %v837
        %v859 = vpack.c.bf16 %v840, %v839
        %v860 = vpack.c.bf16 %v842, %v841
        %v861 = vpack.c.bf16 %v844, %v843
        %v862 = vpack.c.bf16 %v846, %v845
        %v879 = vunpack.c.l.b16 %v847
        %v880 = vunpack.c.h.b16 %v847
        %v881 = vunpack.c.l.b16 %v848
        %v882 = vunpack.c.h.b16 %v848
        %v883 = vunpack.c.l.b16 %v849
        %v884 = vunpack.c.h.b16 %v849
        %v885 = vunpack.c.l.b16 %v850
        %v886 = vunpack.c.h.b16 %v850
        %v887 = vunpack.c.l.b16 %v851
        %v888 = vunpack.c.h.b16 %v851
        %v889 = vunpack.c.l.b16 %v852
        %v890 = vunpack.c.h.b16 %v852
        %v891 = vunpack.c.l.b16 %v853
        %v892 = vunpack.c.h.b16 %v853
        %v893 = vunpack.c.l.b16 %v854
        %v894 = vunpack.c.h.b16 %v854
        %v895 = vunpack.c.l.b16 %v855
        %v896 = vunpack.c.h.b16 %v855
        %v897 = vunpack.c.l.b16 %v856
        %v898 = vunpack.c.h.b16 %v856
        %v899 = vunpack.c.l.b16 %v857
        %v900 = vunpack.c.h.b16 %v857
        %v901 = vunpack.c.l.b16 %v858
        %v902 = vunpack.c.h.b16 %v858
        %v903 = vunpack.c.l.b16 %v859
        %v904 = vunpack.c.h.b16 %v859
        %v905 = vunpack.c.l.b16 %v860
        %v906 = vunpack.c.h.b16 %v860
        %v907 = vunpack.c.l.b16 %v861
        %v908 = vunpack.c.h.b16 %v861
        %v909 = vunpack.c.l.b16 %v862
        %v910 = vunpack.c.h.b16 %v862
        %v911 = vpack.c.b16 %v879, %v879
        %v912 = vpack.c.b16 %v880, %v880
        %v913 = vpack.c.b16 %v881, %v881
        %v914 = vpack.c.b16 %v882, %v882
        %v915 = vpack.c.b16 %v883, %v883
        %v916 = vpack.c.b16 %v884, %v884
        %v917 = vpack.c.b16 %v885, %v885
        %v918 = vpack.c.b16 %v886, %v886
        %v919 = vpack.c.b16 %v887, %v887
        %v920 = vpack.c.b16 %v888, %v888
        %v921 = vpack.c.b16 %v889, %v889
        %v922 = vpack.c.b16 %v890, %v890
        %v923 = vpack.c.b16 %v891, %v891
        %v924 = vpack.c.b16 %v892, %v892
        %v925 = vpack.c.b16 %v893, %v893
        %v926 = vpack.c.b16 %v894, %v894
        %v927 = vpack.c.b16 %v895, %v895
        %v928 = vpack.c.b16 %v896, %v896
        %v929 = vpack.c.b16 %v897, %v897
        %v930 = vpack.c.b16 %v898, %v898
        %v931 = vpack.c.b16 %v899, %v899
        %v932 = vpack.c.b16 %v900, %v900
        %v933 = vpack.c.b16 %v901, %v901
        %v934 = vpack.c.b16 %v902, %v902
        %v935 = vpack.c.b16 %v903, %v903
        %v936 = vpack.c.b16 %v904, %v904
        %v937 = vpack.c.b16 %v905, %v905
        %v938 = vpack.c.b16 %v906, %v906
        %v939 = vpack.c.b16 %v907, %v907
        %v940 = vpack.c.b16 %v908, %v908
        %v941 = vpack.c.b16 %v909, %v909
        %v942 = vpack.c.b16 %v910, %v910
        %975 = vst [vmem:[%s195] sm:$0xf] %v911
        %976 = vst [vmem:[%s195 + $0x4] sm:$0xf] %v912
        %977 = vst [vmem:[%s195 + $0x8] sm:$0xf] %v913
        %978 = vst [vmem:[%s195 + $0xc] sm:$0xf] %v914
        %979 = vst [vmem:[%s195 + $0x10] sm:$0xf] %v915
        %980 = vst [vmem:[%s195 + $0x14] sm:$0xf] %v916
        %981 = vst [vmem:[%s195 + $0x18] sm:$0xf] %v917
        %982 = vst [vmem:[%s195 + $0x1c] sm:$0xf] %v918
        %983 = vst [vmem:[%s195 + $0x20] sm:$0xf] %v919
        %984 = vst [vmem:[%s195 + $0x24] sm:$0xf] %v920
        %985 = vst [vmem:[%s195 + $0x28] sm:$0xf] %v921
        %986 = vst [vmem:[%s195 + $0x2c] sm:$0xf] %v922
        %987 = vst [vmem:[%s195 + $0x30] sm:$0xf] %v923
        %988 = vst [vmem:[%s195 + $0x34] sm:$0xf] %v924
        %989 = vst [vmem:[%s195 + $0x38] sm:$0xf] %v925
        %990 = vst [vmem:[%s195 + $0x3c] sm:$0xf] %v926
        %991 = vst [vmem:[%s195 + $0x40] sm:$0xf] %v927
        %992 = vst [vmem:[%s195 + $0x44] sm:$0xf] %v928
        %993 = vst [vmem:[%s195 + $0x48] sm:$0xf] %v929
        %994 = vst [vmem:[%s195 + $0x4c] sm:$0xf] %v930
        %995 = vst [vmem:[%s195 + $0x50] sm:$0xf] %v931
        %996 = vst [vmem:[%s195 + $0x54] sm:$0xf] %v932
        %997 = vst [vmem:[%s195 + $0x58] sm:$0xf] %v933
        %998 = vst [vmem:[%s195 + $0x5c] sm:$0xf] %v934
        %999 = vst [vmem:[%s195 + $0x60] sm:$0xf] %v935
        %1000 = vst [vmem:[%s195 + $0x64] sm:$0xf] %v936
        %1001 = vst [vmem:[%s195 + $0x68] sm:$0xf] %v937
        %1002 = vst [vmem:[%s195 + $0x6c] sm:$0xf] %v938
        %1003 = vst [vmem:[%s195 + $0x70] sm:$0xf] %v939
        %1004 = vst [vmem:[%s195 + $0x74] sm:$0xf] %v940
        %1005 = vst [vmem:[%s195 + $0x78] sm:$0xf] %v941
        %1006 = vst [vmem:[%s195 + $0x7c] sm:$0xf] %v942
        %v1007 = vpack.c.bf16 %v502, %v498
        %v1008 = vpack.c.bf16 %v512, %v508
        %v1009 = vpack.c.bf16 %v522, %v518
        %v1010 = vpack.c.bf16 %v532, %v528
        %v1011 = vpack.c.bf16 %v542, %v538
        %v1012 = vpack.c.bf16 %v552, %v548
        %v1013 = vpack.c.bf16 %v562, %v558
        %v1014 = vpack.c.bf16 %v572, %v568
        %v1015 = vpack.c.bf16 %v582, %v578
        %v1016 = vpack.c.bf16 %v592, %v588
        %v1017 = vpack.c.bf16 %v602, %v598
        %v1018 = vpack.c.bf16 %v612, %v608
        %v1019 = vpack.c.bf16 %v622, %v618
        %v1020 = vpack.c.bf16 %v632, %v628
        %v1021 = vpack.c.bf16 %v642, %v638
        %v1022 = vpack.c.bf16 %v652, %v648
        %v1039 = vunpack.c.l.b16 %v1007
        %v1040 = vunpack.c.h.b16 %v1007
        %v1041 = vunpack.c.l.b16 %v1008
        %v1042 = vunpack.c.h.b16 %v1008
        %v1043 = vunpack.c.l.b16 %v1009
        %v1044 = vunpack.c.h.b16 %v1009
        %v1045 = vunpack.c.l.b16 %v1010
        %v1046 = vunpack.c.h.b16 %v1010
        %v1047 = vunpack.c.l.b16 %v1011
        %v1048 = vunpack.c.h.b16 %v1011
        %v1049 = vunpack.c.l.b16 %v1012
        %v1050 = vunpack.c.h.b16 %v1012
        %v1051 = vunpack.c.l.b16 %v1013
        %v1052 = vunpack.c.h.b16 %v1013
        %v1053 = vunpack.c.l.b16 %v1014
        %v1054 = vunpack.c.h.b16 %v1014
        %v1055 = vunpack.c.l.b16 %v1015
        %v1056 = vunpack.c.h.b16 %v1015
        %v1057 = vunpack.c.l.b16 %v1016
        %v1058 = vunpack.c.h.b16 %v1016
        %v1059 = vunpack.c.l.b16 %v1017
        %v1060 = vunpack.c.h.b16 %v1017
        %v1061 = vunpack.c.l.b16 %v1018
        %v1062 = vunpack.c.h.b16 %v1018
        %v1063 = vunpack.c.l.b16 %v1019
        %v1064 = vunpack.c.h.b16 %v1019
        %v1065 = vunpack.c.l.b16 %v1020
        %v1066 = vunpack.c.h.b16 %v1020
        %v1067 = vunpack.c.l.b16 %v1021
        %v1068 = vunpack.c.h.b16 %v1021
        %v1069 = vunpack.c.l.b16 %v1022
        %v1070 = vunpack.c.h.b16 %v1022
        %v1071 = vpack.c.b16 %v1039, %v1039
        %v1072 = vpack.c.b16 %v1040, %v1040
        %v1073 = vpack.c.b16 %v1041, %v1041
        %v1074 = vpack.c.b16 %v1042, %v1042
        %v1075 = vpack.c.b16 %v1043, %v1043
        %v1076 = vpack.c.b16 %v1044, %v1044
        %v1077 = vpack.c.b16 %v1045, %v1045
        %v1078 = vpack.c.b16 %v1046, %v1046
        %v1079 = vpack.c.b16 %v1047, %v1047
        %v1080 = vpack.c.b16 %v1048, %v1048
        %v1081 = vpack.c.b16 %v1049, %v1049
        %v1082 = vpack.c.b16 %v1050, %v1050
        %v1083 = vpack.c.b16 %v1051, %v1051
        %v1084 = vpack.c.b16 %v1052, %v1052
        %v1085 = vpack.c.b16 %v1053, %v1053
        %v1086 = vpack.c.b16 %v1054, %v1054
        %v1087 = vpack.c.b16 %v1055, %v1055
        %v1088 = vpack.c.b16 %v1056, %v1056
        %v1089 = vpack.c.b16 %v1057, %v1057
        %v1090 = vpack.c.b16 %v1058, %v1058
        %v1091 = vpack.c.b16 %v1059, %v1059
        %v1092 = vpack.c.b16 %v1060, %v1060
        %v1093 = vpack.c.b16 %v1061, %v1061
        %v1094 = vpack.c.b16 %v1062, %v1062
        %v1095 = vpack.c.b16 %v1063, %v1063
        %v1096 = vpack.c.b16 %v1064, %v1064
        %v1097 = vpack.c.b16 %v1065, %v1065
        %v1098 = vpack.c.b16 %v1066, %v1066
        %v1099 = vpack.c.b16 %v1067, %v1067
        %v1100 = vpack.c.b16 %v1068, %v1068
        %v1101 = vpack.c.b16 %v1069, %v1069
        %v1102 = vpack.c.b16 %v1070, %v1070
        %1135 = vst [vmem:[%s202] sm:$0xf] %v1071
        %1136 = vst [vmem:[%s202 + $0x4] sm:$0xf] %v1072
        %1137 = vst [vmem:[%s202 + $0x8] sm:$0xf] %v1073
        %1138 = vst [vmem:[%s202 + $0xc] sm:$0xf] %v1074
        %1139 = vst [vmem:[%s202 + $0x10] sm:$0xf] %v1075
        %1140 = vst [vmem:[%s202 + $0x14] sm:$0xf] %v1076
        %1141 = vst [vmem:[%s202 + $0x18] sm:$0xf] %v1077
        %1142 = vst [vmem:[%s202 + $0x1c] sm:$0xf] %v1078
        %1143 = vst [vmem:[%s202 + $0x20] sm:$0xf] %v1079
        %1144 = vst [vmem:[%s202 + $0x24] sm:$0xf] %v1080
        %1145 = vst [vmem:[%s202 + $0x28] sm:$0xf] %v1081
        %1146 = vst [vmem:[%s202 + $0x2c] sm:$0xf] %v1082
        %1147 = vst [vmem:[%s202 + $0x30] sm:$0xf] %v1083
        %1148 = vst [vmem:[%s202 + $0x34] sm:$0xf] %v1084
        %1149 = vst [vmem:[%s202 + $0x38] sm:$0xf] %v1085
        %1150 = vst [vmem:[%s202 + $0x3c] sm:$0xf] %v1086
        %1151 = vst [vmem:[%s202 + $0x40] sm:$0xf] %v1087
        %1152 = vst [vmem:[%s202 + $0x44] sm:$0xf] %v1088
        %1153 = vst [vmem:[%s202 + $0x48] sm:$0xf] %v1089
        %1154 = vst [vmem:[%s202 + $0x4c] sm:$0xf] %v1090
        %1155 = vst [vmem:[%s202 + $0x50] sm:$0xf] %v1091
        %1156 = vst [vmem:[%s202 + $0x54] sm:$0xf] %v1092
        %1157 = vst [vmem:[%s202 + $0x58] sm:$0xf] %v1093
        %1158 = vst [vmem:[%s202 + $0x5c] sm:$0xf] %v1094
        %1159 = vst [vmem:[%s202 + $0x60] sm:$0xf] %v1095
        %1160 = vst [vmem:[%s202 + $0x64] sm:$0xf] %v1096
        %1161 = vst [vmem:[%s202 + $0x68] sm:$0xf] %v1097
        %1162 = vst [vmem:[%s202 + $0x6c] sm:$0xf] %v1098
        %1163 = vst [vmem:[%s202 + $0x70] sm:$0xf] %v1099
        %1164 = vst [vmem:[%s202 + $0x74] sm:$0xf] %v1100
        %1165 = vst [vmem:[%s202 + $0x78] sm:$0xf] %v1101
        %1166 = vst [vmem:[%s202 + $0x7c] sm:$0xf] %v1102
        %v1167 = vpack.c.bf16 %v692, %v689
        %v1168 = vpack.c.bf16 %v700, %v697
        %v1169 = vpack.c.bf16 %v708, %v705
        %v1170 = vpack.c.bf16 %v716, %v713
        %v1171 = vpack.c.bf16 %v724, %v721
        %v1172 = vpack.c.bf16 %v732, %v729
        %v1173 = vpack.c.bf16 %v740, %v737
        %v1174 = vpack.c.bf16 %v748, %v745
        %v1175 = vpack.c.bf16 %v756, %v753
        %v1176 = vpack.c.bf16 %v764, %v761
        %v1177 = vpack.c.bf16 %v772, %v769
        %v1178 = vpack.c.bf16 %v780, %v777
        %v1179 = vpack.c.bf16 %v788, %v785
        %v1180 = vpack.c.bf16 %v796, %v793
        %v1181 = vpack.c.bf16 %v804, %v801
        %v1182 = vpack.c.bf16 %v812, %v809
        %v1199 = vunpack.c.l.b16 %v1167
        %v1200 = vunpack.c.h.b16 %v1167
        %v1201 = vunpack.c.l.b16 %v1168
        %v1202 = vunpack.c.h.b16 %v1168
        %v1203 = vunpack.c.l.b16 %v1169
        %v1204 = vunpack.c.h.b16 %v1169
        %v1205 = vunpack.c.l.b16 %v1170
        %v1206 = vunpack.c.h.b16 %v1170
        %v1207 = vunpack.c.l.b16 %v1171
        %v1208 = vunpack.c.h.b16 %v1171
        %v1209 = vunpack.c.l.b16 %v1172
        %v1210 = vunpack.c.h.b16 %v1172
        %v1211 = vunpack.c.l.b16 %v1173
        %v1212 = vunpack.c.h.b16 %v1173
        %v1213 = vunpack.c.l.b16 %v1174
        %v1214 = vunpack.c.h.b16 %v1174
        %v1215 = vunpack.c.l.b16 %v1175
        %v1216 = vunpack.c.h.b16 %v1175
        %v1217 = vunpack.c.l.b16 %v1176
        %v1218 = vunpack.c.h.b16 %v1176
        %v1219 = vunpack.c.l.b16 %v1177
        %v1220 = vunpack.c.h.b16 %v1177
        %v1221 = vunpack.c.l.b16 %v1178
        %v1222 = vunpack.c.h.b16 %v1178
        %v1223 = vunpack.c.l.b16 %v1179
        %v1224 = vunpack.c.h.b16 %v1179
        %v1225 = vunpack.c.l.b16 %v1180
        %v1226 = vunpack.c.h.b16 %v1180
        %v1227 = vunpack.c.l.b16 %v1181
        %v1228 = vunpack.c.h.b16 %v1181
        %v1229 = vunpack.c.l.b16 %v1182
        %v1230 = vunpack.c.h.b16 %v1182
        %v1231 = vpack.c.b16 %v1199, %v1199
        %v1232 = vpack.c.b16 %v1200, %v1200
        %v1233 = vpack.c.b16 %v1201, %v1201
        %v1234 = vpack.c.b16 %v1202, %v1202
        %v1235 = vpack.c.b16 %v1203, %v1203
        %v1236 = vpack.c.b16 %v1204, %v1204
        %v1237 = vpack.c.b16 %v1205, %v1205
        %v1238 = vpack.c.b16 %v1206, %v1206
        %v1239 = vpack.c.b16 %v1207, %v1207
        %v1240 = vpack.c.b16 %v1208, %v1208
        %v1241 = vpack.c.b16 %v1209, %v1209
        %v1242 = vpack.c.b16 %v1210, %v1210
        %v1243 = vpack.c.b16 %v1211, %v1211
        %v1244 = vpack.c.b16 %v1212, %v1212
        %v1245 = vpack.c.b16 %v1213, %v1213
        %v1246 = vpack.c.b16 %v1214, %v1214
        %v1247 = vpack.c.b16 %v1215, %v1215
        %v1248 = vpack.c.b16 %v1216, %v1216
        %v1249 = vpack.c.b16 %v1217, %v1217
        %v1250 = vpack.c.b16 %v1218, %v1218
        %v1251 = vpack.c.b16 %v1219, %v1219
        %v1252 = vpack.c.b16 %v1220, %v1220
        %v1253 = vpack.c.b16 %v1221, %v1221
        %v1254 = vpack.c.b16 %v1222, %v1222
        %v1255 = vpack.c.b16 %v1223, %v1223
        %v1256 = vpack.c.b16 %v1224, %v1224
        %v1257 = vpack.c.b16 %v1225, %v1225
        %v1258 = vpack.c.b16 %v1226, %v1226
        %v1259 = vpack.c.b16 %v1227, %v1227
        %v1260 = vpack.c.b16 %v1228, %v1228
        %v1261 = vpack.c.b16 %v1229, %v1229
        %v1262 = vpack.c.b16 %v1230, %v1230
        %1295 = vst [vmem:[%s209] sm:$0xf] %v1231
        %1296 = vst [vmem:[%s209 + $0x4] sm:$0xf] %v1232
        %1297 = vst [vmem:[%s209 + $0x8] sm:$0xf] %v1233
        %1298 = vst [vmem:[%s209 + $0xc] sm:$0xf] %v1234
        %1299 = vst [vmem:[%s209 + $0x10] sm:$0xf] %v1235
        %1300 = vst [vmem:[%s209 + $0x14] sm:$0xf] %v1236
        %1301 = vst [vmem:[%s209 + $0x18] sm:$0xf] %v1237
        %1302 = vst [vmem:[%s209 + $0x1c] sm:$0xf] %v1238
        %1303 = vst [vmem:[%s209 + $0x20] sm:$0xf] %v1239
        %1304 = vst [vmem:[%s209 + $0x24] sm:$0xf] %v1240
        %1305 = vst [vmem:[%s209 + $0x28] sm:$0xf] %v1241
        %1306 = vst [vmem:[%s209 + $0x2c] sm:$0xf] %v1242
        %1307 = vst [vmem:[%s209 + $0x30] sm:$0xf] %v1243
        %1308 = vst [vmem:[%s209 + $0x34] sm:$0xf] %v1244
        %1309 = vst [vmem:[%s209 + $0x38] sm:$0xf] %v1245
        %1310 = vst [vmem:[%s209 + $0x3c] sm:$0xf] %v1246
        %1311 = vst [vmem:[%s209 + $0x40] sm:$0xf] %v1247
        %1312 = vst [vmem:[%s209 + $0x44] sm:$0xf] %v1248
        %1313 = vst [vmem:[%s209 + $0x48] sm:$0xf] %v1249
        %1314 = vst [vmem:[%s209 + $0x4c] sm:$0xf] %v1250
        %1315 = vst [vmem:[%s209 + $0x50] sm:$0xf] %v1251
        %1316 = vst [vmem:[%s209 + $0x54] sm:$0xf] %v1252
        %1317 = vst [vmem:[%s209 + $0x58] sm:$0xf] %v1253
        %1318 = vst [vmem:[%s209 + $0x5c] sm:$0xf] %v1254
        %1319 = vst [vmem:[%s209 + $0x60] sm:$0xf] %v1255
        %1320 = vst [vmem:[%s209 + $0x64] sm:$0xf] %v1256
        %1321 = vst [vmem:[%s209 + $0x68] sm:$0xf] %v1257
        %1322 = vst [vmem:[%s209 + $0x6c] sm:$0xf] %v1258
        %1323 = vst [vmem:[%s209 + $0x70] sm:$0xf] %v1259
        %1324 = vst [vmem:[%s209 + $0x74] sm:$0xf] %v1260
        %1325 = vst [vmem:[%s209 + $0x78] sm:$0xf] %v1261
        %1326 = vst [vmem:[%s209 + $0x7c] sm:$0xf] %v1262
        %s1327 = sand.u32 %s77, 1
        %s1328 = scalar_lea.sflag [#allocation3], %s1327
        %s1329 = sand.u32 %s77, 1
        %s1330 = smul.addr %s1329, 128
        %s1331 = scalar_lea.vmem [#allocation2], %s1330
        %s1332 = sand.u32 %s22, 1
        %s1333 = scalar_lea.sflag [#allocation5], %s1332
        %s1334 = sand.u32 %s103, 1
        %s1335 = smul.addr %s1334, 128
        %s1336 = scalar_lea.vmem [#allocation4], %s1335
        %s1337 = sand.u32 %s22, 1
        %s1338 = scalar_lea.sflag [#allocation5], %s1337
        %s1339 = sand.u32 %s129, 1
        %s1340 = smul.addr %s1339, 128
        %s1341 = scalar_lea.vmem [#allocation6], %s1340
        // Predicated region
        $region29: #{tpu_custom_call.1} parent=27 // pred_check
          %p1342 = pneg %p87
        $region30: #{tpu_custom_call.1} parent=27 // pred_check_branch
          %1344 = sbr.rel (%p1342) target = $region32
        $region31: #{tpu_custom_call.1} parent=27 // pred_region
          %s1345 = smul.u32 32, %s22
          %s1347 = ssub.s32 2048, 2048
          %1348 = vsyncadd %s1328, %s1347
          %s1349 = smul.addr %s1345, 64
          %s1350 = scalar_lea.hbm %s2, %s1349
          %s1351 = sshll.u32 %s1331, 4
          %s1352 = int_to_ptr.vmem [resolvable:$true] %s1351
          %1357 = dma.vmem_to_hbm [thread:$0]  %s1352, 2048, %s1350, %s1328, 64, 64, 4
        $region32: #{tpu_custom_call.1} parent=27 // pred_fallthru
          _
        // Predicated region
        $region33: #{tpu_custom_call.1} parent=27 // pred_check
          %p1358 = pneg %p113
        $region34: #{tpu_custom_call.1} parent=27 // pred_check_branch
          %1360 = sbr.rel (%p1358) target = $region36
        $region35: #{tpu_custom_call.1} parent=27 // pred_region
          %s1361 = smul.u32 32, %s22
          %s1363 = ssub.s32 2048, 2048
          %1364 = vsyncadd %s1333, %s1363
          %s1365 = smul.addr %s1361, 64
          %s1366 = scalar_lea.hbm %s3, %s1365
          %s1367 = sshll.u32 %s1336, 4
          %s1368 = int_to_ptr.vmem [resolvable:$true] %s1367
          %1373 = dma.vmem_to_hbm [thread:$0]  %s1368, 2048, %s1366, %s1333, 64, 64, 4
        $region36: #{tpu_custom_call.1} parent=27 // pred_fallthru
          _
        // Predicated region
        $region37: #{tpu_custom_call.1} parent=27 // pred_check
          %p1374 = pneg %p139
        $region38: #{tpu_custom_call.1} parent=27 // pred_check_branch
          %1376 = sbr.rel (%p1374) target = $region40
        $region39: #{tpu_custom_call.1} parent=27 // pred_region
          %s1377 = smul.u32 32, %s22
          %s1379 = ssub.s32 2048, 2048
          %1380 = vsyncadd %s1338, %s1379
          %s1381 = smul.addr %s1377, 64
          %s1382 = scalar_lea.hbm %s4, %s1381
          %s1383 = sshll.u32 %s1341, 4
          %s1384 = int_to_ptr.vmem [resolvable:$true] %s1383
          %1389 = dma.vmem_to_hbm [thread:$0]  %s1384, 2048, %s1382, %s1338, 64, 64, 4
        $region40: #{tpu_custom_call.1} parent=27 // pred_fallthru
          _
      $region28: #{tpu_custom_call.1} parent=5 // pred_fallthru
        _
      %p1390 = scmp.le.s32.totalorder 2, %s17
      // Predicated region
      $region41: #{tpu_custom_call.1} parent=5 // pred_check
        %p1391 = pneg %p1390
      $region42: #{tpu_custom_call.1} parent=5 // pred_check_branch
        %1393 = sbr.rel (%p1391) target = $region44
      $region43: #{tpu_custom_call.1} parent=5 // pred_region
        %s1394 = ssub.s32 %s17, 2
        // Predicated region
        $region45: #{tpu_custom_call.1} parent=43 // pred_check
          %p1395 = pneg %p93
        $region46: #{tpu_custom_call.1} parent=43 // pred_check_branch
          %1397 = sbr.rel (%p1395) target = $region48
        $region47: #{tpu_custom_call.1} parent=43 // pred_region
          %s1398 = sand.u32 %s78, 1
          %s1399 = scalar_lea.sflag [#allocation3], %s1398
          %s1400 = sand.u32 %s78, 1
          %s1401 = smul.addr %s1400, 128
          %s1402 = scalar_lea.vmem [#allocation2], %s1401
          %1403 = dma.done %s1399, 2048
        $region48: #{tpu_custom_call.1} parent=43 // pred_fallthru
          _
        // Predicated region
        $region49: #{tpu_custom_call.1} parent=43 // pred_check
          %p1404 = pneg %p119
        $region50: #{tpu_custom_call.1} parent=43 // pred_check_branch
          %1406 = sbr.rel (%p1404) target = $region52
        $region51: #{tpu_custom_call.1} parent=43 // pred_region
          %s1407 = sand.u32 %s23, 1
          %s1408 = scalar_lea.sflag [#allocation5], %s1407
          %s1409 = sand.u32 %s104, 1
          %s1410 = smul.addr %s1409, 128
          %s1411 = scalar_lea.vmem [#allocation4], %s1410
          %1412 = dma.done %s1408, 2048
        $region52: #{tpu_custom_call.1} parent=43 // pred_fallthru
          _
        // Predicated region
        $region53: #{tpu_custom_call.1} parent=43 // pred_check
          %p1413 = pneg %p145
        $region54: #{tpu_custom_call.1} parent=43 // pred_check_branch
          %1415 = sbr.rel (%p1413) target = $region56
        $region55: #{tpu_custom_call.1} parent=43 // pred_region
          %s1416 = sand.u32 %s23, 1
          %s1417 = scalar_lea.sflag [#allocation5], %s1416
          %s1418 = sand.u32 %s130, 1
          %s1419 = smul.addr %s1418, 128
          %s1420 = scalar_lea.vmem [#allocation6], %s1419
          %1421 = dma.done %s1417, 2048
        $region56: #{tpu_custom_call.1} parent=43 // pred_fallthru
          _
      $region44: #{tpu_custom_call.1} parent=5 // pred_fallthru
        _
    $region6: #{tpu_custom_call.1} parent=1 // loop_footer
      %s21 = sadd.s32 1, %s17
    $region7: #{tpu_custom_call.1} parent=1 // loop_footer_branch
      %16 = sbr.rel target = $region3
    $region8: #{tpu_custom_call.1} parent=1 // loop_exit
      _
    %1422 = vsyncpa [#allocation3], 1
    %s1423 = scalar_lea.sflag [#allocation3], 1
    %1424 = vsyncpa %s1423, 1
    %1425 = vsyncpa [#allocation5], 1
    %s1426 = scalar_lea.sflag [#allocation5], 1
    %1427 = vsyncpa %s1426, 1

</llo_original>
